<compile_context>
chip_gen: v5e
topology: v5e:2x2
jax: 0.10.0
libtpu: 0.0.40
codegen_flags: <defaults>
</compile_context>

<pallas_src>
import jax
import jax.numpy as jnp
from jax.experimental import pallas as pl
from jax.experimental.pallas import tpu as pltpu

B, S, H, V = 2, 16, 32, 512        # batch, seq, hidden, vocab (toy shapes)
OUT_LANES = 128                    # lane-dense width of the per-row-loss output


# ----------------------------------------------------------------------------
# Fused kernel: LM head matmul + masked cross-entropy with online logsumexp.
#   grid = (M // TM, V // TV), dimension_semantics = ("parallel", "arbitrary")
#   scratch: running max m, running sum-exp l, running label-logit g  (TM, 1)
# ----------------------------------------------------------------------------
def _fused_lmhead_ce_kernel(x_ref, w_ref, b_ref, lab_ref, o_ref, m_sc, l_sc, g_sc):
    j = pl.program_id(1)

    @pl.when(j == 0)
    def _():
        m_sc[...] = jnp.full_like(m_sc, -jnp.inf)
        l_sc[...] = jnp.zeros_like(l_sc)
        g_sc[...] = jnp.zeros_like(g_sc)

    # (TM, TV) logits tile: bf16 operands -> MXU, f32 accumulation, f32 bias.
    logits = (
        jnp.dot(x_ref[...], w_ref[...], preferred_element_type=jnp.float32)
        + b_ref[...]
    )

    labels = lab_ref[...]                                     # (TM, 1) int32, global ids
    tv = logits.shape[-1]
    # tile-local label comparison: cheap (TM,1) subtract, no (TM,TV) int add.
    local_labels = labels - j * tv
    lane = jax.lax.broadcasted_iota(jnp.int32, logits.shape, 1)

    # online logsumexp over vocab tiles
    m_new = jnp.maximum(m_sc[...], jnp.max(logits, axis=-1, keepdims=True))
    l_sc[...] = l_sc[...] * jnp.exp(m_sc[...] - m_new) + jnp.sum(
        jnp.exp(logits - m_new), axis=-1, keepdims=True
    )
    m_sc[...] = m_new

    # label-logit gather folded into the sweep; -100 / out-of-tile never match.
    g_sc[...] += jnp.sum(
        jnp.where(lane == local_labels, logits, 0.0), axis=-1, keepdims=True
    )

    @pl.when(j == pl.num_programs(1) - 1)
    def _():
        lse = m_sc[...] + jnp.log(l_sc[...])
        per_row = jnp.where(labels == -100, 0.0, lse - g_sc[...])  # (TM, 1)
        # lane-dense, unmasked store: broadcast the per-row loss across lanes.
        o_ref[...] = jnp.broadcast_to(per_row, o_ref.shape)


def fused_lm_head_ce(x_bf16, w_bf16, bias_f32, labels, *, tm=None, tv=None):
    m, h = x_bf16.shape
    h2, v = w_bf16.shape
    assert h2 == h

    # --- tile selection: single grid step at small sizes, big tiles otherwise.
    if tm is None:
        tm = m if m <= 256 else 256            # multiple of 128 for large M
    if tv is None:
        tv = v if v <= 2048 else 1024

    m_pad = ((m + tm - 1) // tm) * tm
    v_pad = ((v + tv - 1) // tv) * tv

    if m_pad != m:
        # padded rows: zero hidden + ignore_index label -> contribute 0 loss.
        x_bf16 = jnp.pad(x_bf16, ((0, m_pad - m), (0, 0)))
        labels = jnp.pad(labels, ((0, m_pad - m), (0, 0)), constant_values=-100)
    if v_pad != v:
        # padded vocab columns: zero weight + very negative bias so they add
        # ~exp(-1e30)=0 to the logsumexp and can never be a label.
        w_bf16 = jnp.pad(w_bf16, ((0, 0), (0, v_pad - v)))
        bias_f32 = jnp.pad(bias_f32, ((0, 0), (0, v_pad - v)), constant_values=-1e30)

    grid = (m_pad // tm, v_pad // tv)

    # VMEM budget: double-buffered input/output blocks + live f32 logits temp
    # + scratch accumulators.  Capped at 64 MiB (v7x physical VMEM).
    est = (
        2 * (tm * h * 2 + h * tv * 2 + tv * 4 + tm * 4 + tm * OUT_LANES * 4)
        + tm * tv * 4
        + 3 * tm * 4
    )
    vmem_limit = int(min(64 * 1024 * 1024, max(2 * est, 16 * 1024 * 1024)))

    out = pl.pallas_call(
        _fused_lmhead_ce_kernel,
        out_shape=jax.ShapeDtypeStruct((m_pad, OUT_LANES), jnp.float32),
        grid_spec=pltpu.PrefetchScalarGridSpec(
            num_scalar_prefetch=0,
            grid=grid,
            in_specs=[
                pl.BlockSpec((tm, h), lambda i, j: (i, 0)),    # hidden rows
                pl.BlockSpec((h, tv), lambda i, j: (0, j)),    # W_head vocab tile
                pl.BlockSpec((1, tv), lambda i, j: (0, j)),    # bias vocab tile
                pl.BlockSpec((tm, 1), lambda i, j: (i, 0)),    # per-row labels
            ],
            out_specs=pl.BlockSpec((tm, OUT_LANES), lambda i, j: (i, 0)),
            scratch_shapes=[pltpu.VMEM((tm, 1), jnp.float32)] * 3,
        ),
        compiler_params=pltpu.CompilerParams(
            dimension_semantics=("parallel", "arbitrary"),
            vmem_limit_bytes=vmem_limit,
        ),
    )(x_bf16, w_bf16, bias_f32, labels)

    return out[:m, 0]                                          # per-row losses


# ----------------------------------------------------------------------------
# End-to-end "_forward": synthetic plm (embedding) -> fused LM head + loss.
# ----------------------------------------------------------------------------
def prompt_for_generation_forward(params, input_ids, loss_ids):
    # TODO(synk): the real prompt_model wraps an arbitrary pretrained LM
    # (transformer stack); replaced here by a deterministic embedding lookup.
    b, s = input_ids.shape
    h = params["embedding"].shape[1]
    hidden = jnp.take(params["embedding"], input_ids, axis=0).reshape(b * s, h)

    # shift_logits_and_labels, done on the integer side in the wrapper:
    # row (bb, ss) with ss < S-1 predicts input_ids[bb, ss+1] iff
    # loss_ids[bb, ss+1] > 0; everything else (incl. the last row of each
    # sequence, whose logits the shift discards) gets ignore_index -100.
    next_ids = jnp.concatenate(
        [input_ids[:, 1:], jnp.full((b, 1), -100, jnp.int32)], axis=-1
    )
    next_loss = jnp.concatenate(
        [loss_ids[:, 1:], jnp.zeros((b, 1), jnp.int32)], axis=-1
    )
    labels = jnp.where(next_loss > 0, next_ids, -100).astype(jnp.int32)
    labels = labels.reshape(b * s, 1)

    per_row = fused_lm_head_ce(
        hidden.astype(jnp.bfloat16),
        params["w_head"].astype(jnp.bfloat16),
        params["b_head"].astype(jnp.float32),
        labels,
    )
    # ignored rows contribute 0 -> sum over sequence, mean over batch
    return jnp.sum(per_row) / b


if __name__ == "__main__":
    key = jax.random.PRNGKey(0)
    k_emb, k_w, k_b, k_ids = jax.random.split(key, 4)

    params = {
        "embedding": jax.random.normal(k_emb, (V, H), jnp.float32) * 0.02,
        "w_head": jax.random.normal(k_w, (H, V), jnp.float32) * 0.02,
        "b_head": jax.random.normal(k_b, (1, V), jnp.float32) * 0.02,
    }

    input_ids = jax.random.randint(k_ids, (B, S), 0, V, dtype=jnp.int32)
    # second half of each sequence is the "generation" (loss) region
    loss_ids = jnp.concatenate(
        [jnp.zeros((B, S // 2), jnp.int32), jnp.ones((B, S - S // 2), jnp.int32)],
        axis=-1,
    )

    loss = prompt_for_generation_forward(params, input_ids, loss_ids)
    loss = jax.block_until_ready(loss)

    # pure-JAX reference of the same forward (shift + masked CE + sum + mean),
    # using the same bf16-operand / f32-accumulate matmul as the kernel.
    hidden = jnp.take(params["embedding"], input_ids, axis=0).reshape(B * S, H)
    ref_logits = (
        jnp.dot(
            hidden.astype(jnp.bfloat16),
            params["w_head"].astype(jnp.bfloat16),
            preferred_element_type=jnp.float32,
        )
        + params["b_head"]
    ).reshape(B, S, V)
    sl = ref_logits[:, :-1, :]
    lab = jnp.where(loss_ids[:, 1:] > 0, input_ids[:, 1:], -100)
    logp = jax.nn.log_softmax(sl, axis=-1)
    gathered = jnp.take_along_axis(logp, jnp.clip(lab, 0)[..., None], axis=-1)[..., 0]
    per = jnp.where(lab == -100, 0.0, -gathered)
    ref_loss = per.sum(axis=-1).mean()

    tol = 1e-3 * (1.0 + abs(float(ref_loss)))
    assert abs(float(loss) - float(ref_loss)) < tol, (float(loss), float(ref_loss))

    print("KERNEL_OK")
</pallas_src>

<mosaic_0001>
module attributes {stable_mosaic.version = 11 : i64} {
  func.func @_fused_lmhead_ce_kernel(%arg0: i32, %arg1: i32, %arg2: memref<32x32xbf16, #tpu.memory_space<vmem>>, %arg3: memref<32x512xbf16, #tpu.memory_space<vmem>>, %arg4: memref<1x512xf32, #tpu.memory_space<vmem>>, %arg5: memref<32x1xi32, #tpu.memory_space<vmem>>, %arg6: memref<32x128xf32, #tpu.memory_space<vmem>>, %arg7: memref<32x1xf32, #tpu.memory_space<vmem>>, %arg8: memref<32x1xf32, #tpu.memory_space<vmem>>, %arg9: memref<32x1xf32, #tpu.memory_space<vmem>>) attributes {dimension_semantics = [#tpu.dimension_semantics<parallel>, #tpu.dimension_semantics<arbitrary>], iteration_bounds = array<i64: 1, 1>, scalar_prefetch = 0 : i64, scratch_operands = 3 : i64, tpu.core_type = #tpu.core_type<tc>, window_params = [{transform_indices = @transform_0, window_bounds = array<i64: 32, 32>}, {transform_indices = @transform_1, window_bounds = array<i64: 32, 512>}, {transform_indices = @transform_2, window_bounds = array<i64: 1, 512>}, {transform_indices = @transform_3, window_bounds = array<i64: 32, 1>}, {transform_indices = @transform_4, window_bounds = array<i64: 32, 128>}]} {
    %c0_i32 = arith.constant 0 : i32
    %0 = arith.cmpi eq, %arg1, %c0_i32 : i32
    %1 = arith.extui %0 : i1 to i32
    %c0_i32_0 = arith.constant 0 : i32
    %2 = arith.cmpi ne, %1, %c0_i32_0 : i32
    scf.if %2 {
      %cst_28 = arith.constant 0xFF800000 : f32
      %43 = vector.broadcast %cst_28 : f32 to vector<32x1xf32>
      %c0_29 = arith.constant 0 : index
      %c0_30 = arith.constant 0 : index
      %44 = vector.load %arg7[%c0_29, %c0_30] : memref<32x1xf32, #tpu.memory_space<vmem>>, vector<32x1xf32>
      tpu.vector_store %arg7[%c0_29, %c0_30], %43 {strides = array<i32>} : memref<32x1xf32, #tpu.memory_space<vmem>>, vector<32x1xf32>,
      %cst_31 = arith.constant 0.000000e+00 : f32
      %45 = vector.broadcast %cst_31 : f32 to vector<32x1xf32>
      %c0_32 = arith.constant 0 : index
      %c0_33 = arith.constant 0 : index
      %46 = vector.load %arg8[%c0_32, %c0_33] : memref<32x1xf32, #tpu.memory_space<vmem>>, vector<32x1xf32>
      tpu.vector_store %arg8[%c0_32, %c0_33], %45 {strides = array<i32>} : memref<32x1xf32, #tpu.memory_space<vmem>>, vector<32x1xf32>,
      %cst_34 = arith.constant 0.000000e+00 : f32
      %47 = vector.broadcast %cst_34 : f32 to vector<32x1xf32>
      %c0_35 = arith.constant 0 : index
      %c0_36 = arith.constant 0 : index
      %48 = vector.load %arg9[%c0_35, %c0_36] : memref<32x1xf32, #tpu.memory_space<vmem>>, vector<32x1xf32>
      tpu.vector_store %arg9[%c0_35, %c0_36], %47 {strides = array<i32>} : memref<32x1xf32, #tpu.memory_space<vmem>>, vector<32x1xf32>,
    } else {
    }
    %c0 = arith.constant 0 : index
    %c0_1 = arith.constant 0 : index
    %3 = vector.load %arg2[%c0, %c0_1] : memref<32x32xbf16, #tpu.memory_space<vmem>>, vector<32x32xbf16>
    %c0_2 = arith.constant 0 : index
    %c0_3 = arith.constant 0 : index
    %4 = vector.load %arg3[%c0_2, %c0_3] : memref<32x512xbf16, #tpu.memory_space<vmem>>, vector<32x512xbf16>
    %cst = arith.constant dense<0.000000e+00> : vector<32x512xf32>
    %5 = tpu.matmul %3, %4, %cst {dimension_numbers = #tpu.dot_dimension_numbers<[1], [0], [0], [1], [0, 0, 1, 1], [], []>} : vector<32x32xbf16>, vector<32x512xbf16>, vector<32x512xf32> -> vector<32x512xf32>
    %c0_4 = arith.constant 0 : index
    %c0_5 = arith.constant 0 : index
    %6 = vector.load %arg4[%c0_4, %c0_5] : memref<1x512xf32, #tpu.memory_space<vmem>>, vector<1x512xf32>
    %7 = vector.broadcast %6 : vector<1x512xf32> to vector<32x512xf32>
    %8 = arith.addf %5, %7 : vector<32x512xf32>
    %c0_6 = arith.constant 0 : index
    %c0_7 = arith.constant 0 : index
    %9 = vector.load %arg5[%c0_6, %c0_7] : memref<32x1xi32, #tpu.memory_space<vmem>>, vector<32x1xi32>
    %c512_i32 = arith.constant 512 : i32
    %10 = arith.muli %arg1, %c512_i32 : i32
    %11 = vector.broadcast %10 : i32 to vector<32x1xi32>
    %12 = arith.subi %9, %11 : vector<32x1xi32>
    %13 = tpu.iota {dimensions = array<i32: 1>} : vector<32x512xi32>
    %c0_8 = arith.constant 0 : index
    %c0_9 = arith.constant 0 : index
    %14 = vector.load %arg7[%c0_8, %c0_9] : memref<32x1xf32, #tpu.memory_space<vmem>>, vector<32x1xf32>
    %cst_10 = arith.constant dense<0xFF800000> : vector<32xf32>
    %15 = vector.multi_reduction <maximumf>, %8, %cst_10 [1] : vector<32x512xf32> to vector<32xf32>
    %16 = vector.shape_cast %15 : vector<32xf32> to vector<32x1xf32>
    %17 = arith.maximumf %14, %16 : vector<32x1xf32>
    %c0_11 = arith.constant 0 : index
    %c0_12 = arith.constant 0 : index
    %18 = vector.load %arg8[%c0_11, %c0_12] : memref<32x1xf32, #tpu.memory_space<vmem>>, vector<32x1xf32>
    %c0_13 = arith.constant 0 : index
    %c0_14 = arith.constant 0 : index
    %19 = vector.load %arg7[%c0_13, %c0_14] : memref<32x1xf32, #tpu.memory_space<vmem>>, vector<32x1xf32>
    %20 = arith.subf %19, %17 : vector<32x1xf32>
    %21 = math.exp %20 : vector<32x1xf32>
    %22 = arith.mulf %18, %21 : vector<32x1xf32>
    %23 = vector.broadcast %17 : vector<32x1xf32> to vector<32x512xf32>
    %24 = arith.subf %8, %23 : vector<32x512xf32>
    %25 = math.exp %24 : vector<32x512xf32>
    %cst_15 = arith.constant dense<0.000000e+00> : vector<32xf32>
    %26 = vector.multi_reduction <add>, %25, %cst_15 [1] : vector<32x512xf32> to vector<32xf32>
    %27 = vector.shape_cast %26 : vector<32xf32> to vector<32x1xf32>
    %28 = arith.addf %22, %27 : vector<32x1xf32>
    %c0_16 = arith.constant 0 : index
    %c0_17 = arith.constant 0 : index
    %29 = vector.load %arg8[%c0_16, %c0_17] : memref<32x1xf32, #tpu.memory_space<vmem>>, vector<32x1xf32>
    tpu.vector_store %arg8[%c0_16, %c0_17], %28 {strides = array<i32>} : memref<32x1xf32, #tpu.memory_space<vmem>>, vector<32x1xf32>,
    %c0_18 = arith.constant 0 : index
    %c0_19 = arith.constant 0 : index
    %30 = vector.load %arg7[%c0_18, %c0_19] : memref<32x1xf32, #tpu.memory_space<vmem>>, vector<32x1xf32>
    tpu.vector_store %arg7[%c0_18, %c0_19], %17 {strides = array<i32>} : memref<32x1xf32, #tpu.memory_space<vmem>>, vector<32x1xf32>,
    %c0_20 = arith.constant 0 : index
    %c0_21 = arith.constant 0 : index
    %31 = vector.load %arg9[%c0_20, %c0_21] : memref<32x1xf32, #tpu.memory_space<vmem>>, vector<32x1xf32>
    %32 = vector.broadcast %12 : vector<32x1xi32> to vector<32x512xi32>
    %33 = arith.cmpi eq, %13, %32 : vector<32x512xi32>
    %cst_22 = arith.constant 0.000000e+00 : f32
    %34 = vector.broadcast %cst_22 : f32 to vector<32x512xf32>
    %35 = arith.select %33, %8, %34 : vector<32x512xi1>, vector<32x512xf32>
    %cst_23 = arith.constant dense<0.000000e+00> : vector<32xf32>
    %36 = vector.multi_reduction <add>, %35, %cst_23 [1] : vector<32x512xf32> to vector<32xf32>
    %37 = vector.shape_cast %36 : vector<32xf32> to vector<32x1xf32>
    %38 = arith.addf %31, %37 : vector<32x1xf32>
    %c0_24 = arith.constant 0 : index
    %c0_25 = arith.constant 0 : index
    %39 = vector.load %arg9[%c0_24, %c0_25] : memref<32x1xf32, #tpu.memory_space<vmem>>, vector<32x1xf32>
    tpu.vector_store %arg9[%c0_24, %c0_25], %38 {strides = array<i32>} : memref<32x1xf32, #tpu.memory_space<vmem>>, vector<32x1xf32>,
    %c0_i32_26 = arith.constant 0 : i32
    %40 = arith.cmpi eq, %arg1, %c0_i32_26 : i32
    %41 = arith.extui %40 : i1 to i32
    %c0_i32_27 = arith.constant 0 : i32
    %42 = arith.cmpi ne, %41, %c0_i32_27 : i32
    scf.if %42 {
      %c0_28 = arith.constant 0 : index
      %c0_29 = arith.constant 0 : index
      %43 = vector.load %arg7[%c0_28, %c0_29] : memref<32x1xf32, #tpu.memory_space<vmem>>, vector<32x1xf32>
      %c0_30 = arith.constant 0 : index
      %c0_31 = arith.constant 0 : index
      %44 = vector.load %arg8[%c0_30, %c0_31] : memref<32x1xf32, #tpu.memory_space<vmem>>, vector<32x1xf32>
      %45 = math.log %44 : vector<32x1xf32>
      %46 = arith.addf %43, %45 : vector<32x1xf32>
      %c-100_i32 = arith.constant -100 : i32
      %47 = vector.broadcast %c-100_i32 : i32 to vector<32x1xi32>
      %48 = arith.cmpi eq, %9, %47 : vector<32x1xi32>
      %c0_32 = arith.constant 0 : index
      %c0_33 = arith.constant 0 : index
      %49 = vector.load %arg9[%c0_32, %c0_33] : memref<32x1xf32, #tpu.memory_space<vmem>>, vector<32x1xf32>
      %50 = arith.subf %46, %49 : vector<32x1xf32>
      %cst_34 = arith.constant 0.000000e+00 : f32
      %51 = vector.broadcast %cst_34 : f32 to vector<32x1xf32>
      %52 = arith.select %48, %51, %50 : vector<32x1xi1>, vector<32x1xf32>
      %53 = vector.shape_cast %52 : vector<32x1xf32> to vector<32x1xf32>
      %54 = vector.broadcast %53 : vector<32x1xf32> to vector<32x128xf32>
      %c0_35 = arith.constant 0 : index
      %c0_36 = arith.constant 0 : index
      %55 = vector.load %arg6[%c0_35, %c0_36] : memref<32x128xf32, #tpu.memory_space<vmem>>, vector<32x128xf32>
      tpu.vector_store %arg6[%c0_35, %c0_36], %54 {strides = array<i32>} : memref<32x128xf32, #tpu.memory_space<vmem>>, vector<32x128xf32>,
    } else {
    }
    return
  }
  func.func @transform_0(%arg0: i32, %arg1: i32) -> (i32, i32) {
    %c0_i32 = arith.constant 0 : i32
    %c0_i32_0 = arith.constant 0 : i32
    return %arg0, %c0_i32 : i32, i32
  }
  func.func @transform_1(%arg0: i32, %arg1: i32) -> (i32, i32) {
    %c0_i32 = arith.constant 0 : i32
    %c0_i32_0 = arith.constant 0 : i32
    return %c0_i32, %arg1 : i32, i32
  }
  func.func @transform_2(%arg0: i32, %arg1: i32) -> (i32, i32) {
    %c0_i32 = arith.constant 0 : i32
    %c0_i32_0 = arith.constant 0 : i32
    return %c0_i32, %arg1 : i32, i32
  }
  func.func @transform_3(%arg0: i32, %arg1: i32) -> (i32, i32) {
    %c0_i32 = arith.constant 0 : i32
    %c0_i32_0 = arith.constant 0 : i32
    return %arg0, %c0_i32 : i32, i32
  }
  func.func @transform_4(%arg0: i32, %arg1: i32) -> (i32, i32) {
    %c0_i32 = arith.constant 0 : i32
    %c0_i32_0 = arith.constant 0 : i32
    return %arg0, %c0_i32 : i32, i32
  }
}

</mosaic_0001>

<llo_original>
// kernel: tpu_custom_call.1
$region0: #{tpu_custom_call.1}
  #allocation0 [shape = 'u32[]', space=smem, size = 0x4, offset = 0x4, fixed_abs, tag = 'smem constant byte address 0x4 - core index']
  #allocation1 [shape = 'u32[72,128]{1,0:T(1,128)}', space=vmem, size = 0x9000, scoped, tag = 'internal scratch']
  #allocation2 [shape = 'f32[32,1]{1,0:T(8,128)}', space=vmem, size = 0x4000, scoped, tag = 'scratch operand']
  #allocation3 [shape = 'f32[32,1]{1,0:T(8,128)}', space=vmem, size = 0x4000, scoped, tag = 'scratch operand']
  #allocation4 [shape = 'f32[32,1]{1,0:T(8,128)}', space=vmem, size = 0x4000, scoped, tag = 'scratch operand']
  %s0 = inlined_call_operand.vmem [shape: bf16[32,32], index: 0, kind: input, shape index: {}]
  %s1 = inlined_call_operand.hbm [shape: bf16[32,512], index: 1, kind: input, shape index: {}]
  %s2 = inlined_call_operand.vmem [shape: f32[1,512], index: 2, kind: input, shape index: {}]
  %s3 = inlined_call_operand.vmem [shape: s32[32,1], index: 3, kind: input, shape index: {}]
  %s4 = inlined_call_operand.hbm [shape: f32[32,128], index: 4, kind: output, shape index: {}]
  %s5 = sld [smem:[#allocation0]]
  $region38: #{tpu_custom_call.1} parent=0
    _
  %s7 = ssub.s32 1, %s5
  %s8 = scalar_select 0, %s7, %s5
  $region1: #{tpu_custom_call.1} parent=0
    #allocation5 [shape = 'u8[32768]{0}', space=vmem, size = 0x8000, scoped, tag = 'input window, operand 1, single buffered']
    #allocation6 [shape = 's32[1]{0}', space=sflag, size = 0x4, scoped, tag = 'scoped memory for tpu_custom_call.1']
    #allocation7 [shape = 's32[1]{0}', space=sflag, size = 0x4, scoped, tag = 'scoped memory for tpu_custom_call.1']
    #allocation8 [shape = 'u8[16384]{0}', space=vmem, size = 0x4000, scoped, tag = 'output window, operand 0, single buffered']
    %9 = vsyncpa [#allocation6], 0
    %10 = vsyncpa [#allocation7], 0
    // Predicated region
    $region2: #{tpu_custom_call.1} parent=1 // pred_check
      _
    $region3: #{tpu_custom_call.1} parent=1 // pred_check_branch
      %12 = sbr.rel (0) target = $region5
    $region4: #{tpu_custom_call.1} parent=1 // pred_region
      _
    $region5: #{tpu_custom_call.1} parent=1 // pred_fallthru
      _
    // Predicated region
    $region6: #{tpu_custom_call.1} parent=1 // pred_check
      _
    $region7: #{tpu_custom_call.1} parent=1 // pred_check_branch
      %14 = sbr.rel (0) target = $region9
    $region8: #{tpu_custom_call.1} parent=1 // pred_region
      %16 = vsyncadd [#allocation6], 0
      %s17 = sshll.u32 %s1, 4
      %s18 = int_to_ptr.hbm [resolvable:$true] %s17
      %s19 = sshll.u32 [#allocation5], 4
      %s20 = int_to_ptr.vmem [resolvable:$true] %s19
      %25 = dma.hbm_to_vmem [thread:$0]  %s18, 1024, %s20, [#allocation6], 256, 256, 16
    $region9: #{tpu_custom_call.1} parent=1 // pred_fallthru
      _
    // Predicated region
    $region10: #{tpu_custom_call.1} parent=1 // pred_check
      _
    $region11: #{tpu_custom_call.1} parent=1 // pred_check_branch
      %27 = sbr.rel (0) target = $region13
    $region12: #{tpu_custom_call.1} parent=1 // pred_region
      _
    $region13: #{tpu_custom_call.1} parent=1 // pred_fallthru
      _
    // Predicated region
    $region14: #{tpu_custom_call.1} parent=1 // pred_check
      _
    $region15: #{tpu_custom_call.1} parent=1 // pred_check_branch
      %29 = sbr.rel (0) target = $region17
    $region16: #{tpu_custom_call.1} parent=1 // pred_region
      _
    $region17: #{tpu_custom_call.1} parent=1 // pred_fallthru
      _
    // Predicated region
    $region18: #{tpu_custom_call.1} parent=1 // pred_check
      _
    $region19: #{tpu_custom_call.1} parent=1 // pred_check_branch
      %31 = sbr.rel (0) target = $region21
    $region20: #{tpu_custom_call.1} parent=1 // pred_region
      %33 = dma.done [#allocation6], 1024
    $region21: #{tpu_custom_call.1} parent=1 // pred_fallthru
      _
    %p35 = scmp.eq.s32.totalorder 0, 0
    // Predicated region
    $region22: #{tpu_custom_call.1} parent=1 // pred_check
      %p36 = pneg %p35
    $region23: #{tpu_custom_call.1} parent=1 // pred_check_branch
      %38 = sbr.rel (%p36) target = $region25
    $region24: #{tpu_custom_call.1} parent=1 // pred_region
      %vm39 = vcmask 7168
      %40 = vst.msk [vmem:[#allocation2] sm:$0xff] %vm39, -inf
      %41 = vst.msk [vmem:[#allocation2 + $0x8] sm:$0xff] %vm39, -inf
      %42 = vst.msk [vmem:[#allocation2 + $0x10] sm:$0xff] %vm39, -inf
      %43 = vst.msk [vmem:[#allocation2 + $0x18] sm:$0xff] %vm39, -inf
      %44 = vst.msk [vmem:[#allocation3] sm:$0xff] %vm39, 0.0
      %45 = vst.msk [vmem:[#allocation3 + $0x8] sm:$0xff] %vm39, 0.0
      %46 = vst.msk [vmem:[#allocation3 + $0x10] sm:$0xff] %vm39, 0.0
      %47 = vst.msk [vmem:[#allocation3 + $0x18] sm:$0xff] %vm39, 0.0
      %48 = vst.msk [vmem:[#allocation4] sm:$0xff] %vm39, 0.0
      %49 = vst.msk [vmem:[#allocation4 + $0x8] sm:$0xff] %vm39, 0.0
      %50 = vst.msk [vmem:[#allocation4 + $0x10] sm:$0xff] %vm39, 0.0
      %51 = vst.msk [vmem:[#allocation4 + $0x18] sm:$0xff] %vm39, 0.0
    $region25: #{tpu_custom_call.1} parent=1 // pred_fallthru
      _
    %v52 = vld [vmem:[%s0] sm:$0xf]
    %v53 = vld [vmem:[%s0 + $0x4] sm:$0xf]
    %v54 = vld [vmem:[%s0 + $0x8] sm:$0xf]
    %v55 = vld [vmem:[%s0 + $0xc] sm:$0xf]
    %v56 = vld [vmem:[#allocation5] sm:$0xff]
    %v57 = vld [vmem:[#allocation5 + $0x8] sm:$0xff]
    %v58 = vld [vmem:[#allocation5 + $0x10] sm:$0xff]
    %v59 = vld [vmem:[#allocation5 + $0x18] sm:$0xff]
    %v60 = vld [vmem:[#allocation5 + $0x20] sm:$0xff]
    %v61 = vld [vmem:[#allocation5 + $0x28] sm:$0xff]
    %v62 = vld [vmem:[#allocation5 + $0x30] sm:$0xff]
    %v63 = vld [vmem:[#allocation5 + $0x38] sm:$0xff]
    %v64 = vld [vmem:[%s2] sm:$0xf]
    %v66 = vperm.slane %v64, 0
    %v67 = vperm.slane %v64, 1
    %v68 = vperm.slane %v64, 2
    %v69 = vperm.slane %v64, 3
    %v78 = vunpack.c.l.b16 %v52
    %v79 = vunpack.c.l.b16 %v53
    %v80 = vunpack.c.l.b16 %v54
    %v81 = vunpack.c.l.b16 %v55
    %v82 = vpack.c.b16 %v79, %v78
    %v83 = vpack.c.b16 %v81, %v80
    %v92 = vunpack.c.l.b16 %v56
    %v93 = vunpack.c.h.b16 %v56
    %v94 = vunpack.c.l.b16 %v57
    %v95 = vunpack.c.h.b16 %v57
    %v96 = vunpack.c.l.b16 %v58
    %v97 = vunpack.c.h.b16 %v58
    %v98 = vunpack.c.l.b16 %v59
    %v99 = vunpack.c.h.b16 %v59
    %v100 = vunpack.c.l.b16 %v60
    %v101 = vunpack.c.h.b16 %v60
    %v102 = vunpack.c.l.b16 %v61
    %v103 = vunpack.c.h.b16 %v61
    %v104 = vunpack.c.l.b16 %v62
    %v105 = vunpack.c.h.b16 %v62
    %v106 = vunpack.c.l.b16 %v63
    %v107 = vunpack.c.h.b16 %v63
    %v108 = vpack.c.b16 %v96, %v92
    %v109 = vpack.c.b16 %v97, %v93
    %v110 = vpack.c.b16 %v98, %v94
    %v111 = vpack.c.b16 %v99, %v95
    %v112 = vpack.c.b16 %v104, %v100
    %v113 = vpack.c.b16 %v105, %v101
    %v114 = vpack.c.b16 %v106, %v102
    %v115 = vpack.c.b16 %v107, %v103
    %vm124 = vcmask 261120
    %v126 = vsel %vm124, %v82, 0
    %v129 = vsel %vm124, %v83, 0
    %131 = vmatpush.bf16.msra.mxu0 0
    %132 = vmatpush.bf16.msra.mxu0 0
    %133 = vmatpush.bf16.msra.mxu0 0
    %134 = vmatpush.bf16.msra.mxu0 0
    %135 = vmatpush.bf16.msra.mxu0 0
    %136 = vmatpush.bf16.msra.mxu0 0
    %137 = vmatpush.bf16.msra.mxu0 %v112
    %138 = vmatpush.bf16.msra.mxu0 %v108
    %139 = vmatmul.bf16.gmra.mxu0 %v126
    %v140 = vpop.f32.mrf.mxu0
    %v141 = vadd.f32 %v66, %v140
    %v142 = vpop.f32.mrf.mxu0
    %v143 = vadd.f32 %v66, %v142
    %144 = vmatmul.bf16.gmra.mxu0 %v129
    %v145 = vpop.f32.mrf.mxu0
    %v146 = vadd.f32 %v66, %v145
    %v147 = vpop.f32.mrf.mxu0
    %v148 = vadd.f32 %v66, %v147
    %149 = vdwg.mxu0
    %150 = vmatpush.bf16.msra.mxu0 0
    %151 = vmatpush.bf16.msra.mxu0 0
    %152 = vmatpush.bf16.msra.mxu0 0
    %153 = vmatpush.bf16.msra.mxu0 0
    %154 = vmatpush.bf16.msra.mxu0 0
    %155 = vmatpush.bf16.msra.mxu0 0
    %156 = vmatpush.bf16.msra.mxu0 %v113
    %157 = vmatpush.bf16.msra.mxu0 %v109
    %158 = vmatmul.bf16.gmra.mxu0 %v126
    %v159 = vpop.f32.mrf.mxu0
    %v160 = vadd.f32 %v67, %v159
    %v161 = vpop.f32.mrf.mxu0
    %v162 = vadd.f32 %v67, %v161
    %163 = vmatmul.bf16.gmra.mxu0 %v129
    %v164 = vpop.f32.mrf.mxu0
    %v165 = vadd.f32 %v67, %v164
    %v166 = vpop.f32.mrf.mxu0
    %v167 = vadd.f32 %v67, %v166
    %168 = vdwg.mxu0
    %169 = vmatpush.bf16.msra.mxu0 0
    %170 = vmatpush.bf16.msra.mxu0 0
    %171 = vmatpush.bf16.msra.mxu0 0
    %172 = vmatpush.bf16.msra.mxu0 0
    %173 = vmatpush.bf16.msra.mxu0 0
    %174 = vmatpush.bf16.msra.mxu0 0
    %175 = vmatpush.bf16.msra.mxu0 %v114
    %176 = vmatpush.bf16.msra.mxu0 %v110
    %177 = vmatmul.bf16.gmra.mxu0 %v126
    %v178 = vpop.f32.mrf.mxu0
    %v179 = vadd.f32 %v68, %v178
    %v180 = vpop.f32.mrf.mxu0
    %v181 = vadd.f32 %v68, %v180
    %182 = vmatmul.bf16.gmra.mxu0 %v129
    %v183 = vpop.f32.mrf.mxu0
    %v184 = vadd.f32 %v68, %v183
    %v185 = vpop.f32.mrf.mxu0
    %v186 = vadd.f32 %v68, %v185
    %187 = vdwg.mxu0
    %188 = vmatpush.bf16.msra.mxu0 0
    %189 = vmatpush.bf16.msra.mxu0 0
    %190 = vmatpush.bf16.msra.mxu0 0
    %191 = vmatpush.bf16.msra.mxu0 0
    %192 = vmatpush.bf16.msra.mxu0 0
    %193 = vmatpush.bf16.msra.mxu0 0
    %194 = vmatpush.bf16.msra.mxu0 %v115
    %195 = vmatpush.bf16.msra.mxu0 %v111
    %196 = vmatmul.bf16.gmra.mxu0 %v126
    %v197 = vpop.f32.mrf.mxu0
    %v198 = vadd.f32 %v69, %v197
    %v199 = vpop.f32.mrf.mxu0
    %v200 = vadd.f32 %v69, %v199
    %201 = vmatmul.bf16.gmra.mxu0 %v129
    %v202 = vpop.f32.mrf.mxu0
    %v203 = vadd.f32 %v69, %v202
    %v204 = vpop.f32.mrf.mxu0
    %v205 = vadd.f32 %v69, %v204
    %206 = vdwg.mxu0
    %v207 = vld [vmem:[%s3] sm:$0xff]
    %v208 = vld [vmem:[%s3 + $0x8] sm:$0xff]
    %v209 = vld [vmem:[%s3 + $0x10] sm:$0xff]
    %v210 = vld [vmem:[%s3 + $0x18] sm:$0xff]
    %s211 = smul.u32 0, 512
    %v212 = vstv %s211
    %v213 = vsub.s32 %v207, %v212
    %v214 = vsub.s32 %v208, %v212
    %v215 = vsub.s32 %v209, %v212
    %v216 = vsub.s32 %v210, %v212
    %v217 = vlaneseq
    %v218 = vand.u32 %v217, 127
    %v219 = vadd.s32 %v218, 128
    %v220 = vadd.s32 %v218, 256
    %v221 = vadd.s32 %v218, 384
    %v222 = vld [vmem:[#allocation2] sm:$0xff]
    %v223 = vld [vmem:[#allocation2 + $0x8] sm:$0xff]
    %v224 = vld [vmem:[#allocation2 + $0x10] sm:$0xff]
    %v225 = vld [vmem:[#allocation2 + $0x18] sm:$0xff]
    %v226 = vmax.f32 %v141, %v160
    %v227 = vmax.f32 %v226, %v179
    %v228 = vmax.f32 %v227, %v198
    %229 = vmax.xlane.f32.xlu0 %v228
    %v230 = vpop.xlane.xlu0 %229
    %v231 = vmax.f32 %v143, %v162
    %v232 = vmax.f32 %v231, %v181
    %v233 = vmax.f32 %v232, %v200
    %234 = vmax.xlane.f32.xlu0 %v233
    %v235 = vpop.xlane.xlu0 %234
    %v236 = vmax.f32 %v146, %v165
    %v237 = vmax.f32 %v236, %v184
    %v238 = vmax.f32 %v237, %v203
    %239 = vmax.xlane.f32.xlu0 %v238
    %v240 = vpop.xlane.xlu0 %239
    %v241 = vmax.f32 %v148, %v167
    %v242 = vmax.f32 %v241, %v186
    %v243 = vmax.f32 %v242, %v205
    %244 = vmax.xlane.f32.xlu0 %v243
    %v245 = vpop.xlane.xlu0 %244
    %v246 = vmax.f32 %v222, %v230
    %v247 = vmax.f32 %v223, %v235
    %v248 = vmax.f32 %v224, %v240
    %v249 = vmax.f32 %v225, %v245
    %v250 = vld [vmem:[#allocation3] sm:$0xff]
    %v251 = vld [vmem:[#allocation3 + $0x8] sm:$0xff]
    %v252 = vld [vmem:[#allocation3 + $0x10] sm:$0xff]
    %v253 = vld [vmem:[#allocation3 + $0x18] sm:$0xff]
    %v254 = vsub.f32 %v222, %v246
    %v255 = vsub.f32 %v223, %v247
    %v256 = vsub.f32 %v224, %v248
    %v257 = vsub.f32 %v225, %v249
    %v258 = vmul.f32 %v254, 1.442695
    %v259 = vpow.pop %v258
    %v260 = vmul.f32 %v255, 1.442695
    %v261 = vpow.pop %v260
    %v262 = vmul.f32 %v256, 1.442695
    %v263 = vpow.pop %v262
    %v264 = vmul.f32 %v257, 1.442695
    %v265 = vpow.pop %v264
    %v266 = vmul.f32 %v250, %v259
    %v267 = vmul.f32 %v251, %v261
    %v268 = vmul.f32 %v252, %v263
    %v269 = vmul.f32 %v253, %v265
    %271 = vset.pattern.permute.xlu0 0
    %272 = vperm.xlu0 %271, %v246
    %v273 = vpop.permute.xlu0 %272
    %276 = vset.pattern.permute.xlu0 0
    %277 = vperm.xlu0 %276, %v247
    %v278 = vpop.permute.xlu0 %277
    %281 = vset.pattern.permute.xlu0 0
    %282 = vperm.xlu0 %281, %v248
    %v283 = vpop.permute.xlu0 %282
    %286 = vset.pattern.permute.xlu0 0
    %287 = vperm.xlu0 %286, %v249
    %v288 = vpop.permute.xlu0 %287
    %v290 = vsub.f32 %v141, %v273
    %v291 = vsub.f32 %v160, %v273
    %v292 = vsub.f32 %v179, %v273
    %v293 = vsub.f32 %v198, %v273
    %v294 = vsub.f32 %v143, %v278
    %v295 = vsub.f32 %v162, %v278
    %v296 = vsub.f32 %v181, %v278
    %v297 = vsub.f32 %v200, %v278
    %v298 = vsub.f32 %v146, %v283
    %v299 = vsub.f32 %v165, %v283
    %v300 = vsub.f32 %v184, %v283
    %v301 = vsub.f32 %v203, %v283
    %v302 = vsub.f32 %v148, %v288
    %v303 = vsub.f32 %v167, %v288
    %v304 = vsub.f32 %v186, %v288
    %v305 = vsub.f32 %v205, %v288
    %v306 = vmul.f32 %v290, 1.442695
    %v307 = vpow.pop %v306
    %v308 = vmul.f32 %v291, 1.442695
    %v309 = vpow.pop %v308
    %v310 = vmul.f32 %v292, 1.442695
    %v311 = vpow.pop %v310
    %v312 = vmul.f32 %v293, 1.442695
    %v313 = vpow.pop %v312
    %v314 = vmul.f32 %v294, 1.442695
    %v315 = vpow.pop %v314
    %v316 = vmul.f32 %v295, 1.442695
    %v317 = vpow.pop %v316
    %v318 = vmul.f32 %v296, 1.442695
    %v319 = vpow.pop %v318
    %v320 = vmul.f32 %v297, 1.442695
    %v321 = vpow.pop %v320
    %v322 = vmul.f32 %v298, 1.442695
    %v323 = vpow.pop %v322
    %v324 = vmul.f32 %v299, 1.442695
    %v325 = vpow.pop %v324
    %v326 = vmul.f32 %v300, 1.442695
    %v327 = vpow.pop %v326
    %v328 = vmul.f32 %v301, 1.442695
    %v329 = vpow.pop %v328
    %v330 = vmul.f32 %v302, 1.442695
    %v331 = vpow.pop %v330
    %v332 = vmul.f32 %v303, 1.442695
    %v333 = vpow.pop %v332
    %v334 = vmul.f32 %v304, 1.442695
    %v335 = vpow.pop %v334
    %v336 = vmul.f32 %v305, 1.442695
    %v337 = vpow.pop %v336
    %v338 = vadd.f32 %v307, %v309
    %v339 = vadd.f32 %v338, %v311
    %v340 = vadd.f32 %v339, %v313
    %341 = vadd.xlane.f32.xlu0 %v340
    %v342 = vpop.xlane.xlu0 %341
    %v343 = vadd.f32 %v315, %v317
    %v344 = vadd.f32 %v343, %v319
    %v345 = vadd.f32 %v344, %v321
    %346 = vadd.xlane.f32.xlu0 %v345
    %v347 = vpop.xlane.xlu0 %346
    %v348 = vadd.f32 %v323, %v325
    %v349 = vadd.f32 %v348, %v327
    %v350 = vadd.f32 %v349, %v329
    %351 = vadd.xlane.f32.xlu0 %v350
    %v352 = vpop.xlane.xlu0 %351
    %v353 = vadd.f32 %v331, %v333
    %v354 = vadd.f32 %v353, %v335
    %v355 = vadd.f32 %v354, %v337
    %356 = vadd.xlane.f32.xlu0 %v355
    %v357 = vpop.xlane.xlu0 %356
    %v358 = vadd.f32 %v266, %v342
    %v359 = vadd.f32 %v267, %v347
    %v360 = vadd.f32 %v268, %v352
    %v361 = vadd.f32 %v269, %v357
    %vm362 = vcmask 7168
    %363 = vst.msk [vmem:[#allocation3] sm:$0xff] %vm362, %v358
    %364 = vst.msk [vmem:[#allocation3 + $0x8] sm:$0xff] %vm362, %v359
    %365 = vst.msk [vmem:[#allocation3 + $0x10] sm:$0xff] %vm362, %v360
    %366 = vst.msk [vmem:[#allocation3 + $0x18] sm:$0xff] %vm362, %v361
    %367 = vst.msk [vmem:[#allocation2] sm:$0xff] %vm362, %v246
    %368 = vst.msk [vmem:[#allocation2 + $0x8] sm:$0xff] %vm362, %v247
    %369 = vst.msk [vmem:[#allocation2 + $0x10] sm:$0xff] %vm362, %v248
    %370 = vst.msk [vmem:[#allocation2 + $0x18] sm:$0xff] %vm362, %v249
    %v371 = vld [vmem:[#allocation4] sm:$0xff]
    %v372 = vld [vmem:[#allocation4 + $0x8] sm:$0xff]
    %v373 = vld [vmem:[#allocation4 + $0x10] sm:$0xff]
    %v374 = vld [vmem:[#allocation4 + $0x18] sm:$0xff]
    %375 = vset.pattern.permute.xlu0 0
    %376 = vperm.xlu0 %375, %v213
    %v377 = vpop.permute.xlu0 %376
    %378 = vset.pattern.permute.xlu0 0
    %379 = vperm.xlu0 %378, %v214
    %v380 = vpop.permute.xlu0 %379
    %381 = vset.pattern.permute.xlu0 0
    %382 = vperm.xlu0 %381, %v215
    %v383 = vpop.permute.xlu0 %382
    %384 = vset.pattern.permute.xlu0 0
    %385 = vperm.xlu0 %384, %v216
    %v386 = vpop.permute.xlu0 %385
    %vm387 = vcmp.eq.s32.totalorder %v218, %v377
    %vm388 = vcmp.eq.s32.totalorder %v219, %v377
    %vm389 = vcmp.eq.s32.totalorder %v220, %v377
    %vm390 = vcmp.eq.s32.totalorder %v221, %v377
    %vm391 = vcmp.eq.s32.totalorder %v218, %v380
    %vm392 = vcmp.eq.s32.totalorder %v219, %v380
    %vm393 = vcmp.eq.s32.totalorder %v220, %v380
    %vm394 = vcmp.eq.s32.totalorder %v221, %v380
    %vm395 = vcmp.eq.s32.totalorder %v218, %v383
    %vm396 = vcmp.eq.s32.totalorder %v219, %v383
    %vm397 = vcmp.eq.s32.totalorder %v220, %v383
    %vm398 = vcmp.eq.s32.totalorder %v221, %v383
    %vm399 = vcmp.eq.s32.totalorder %v218, %v386
    %vm400 = vcmp.eq.s32.totalorder %v219, %v386
    %vm401 = vcmp.eq.s32.totalorder %v220, %v386
    %vm402 = vcmp.eq.s32.totalorder %v221, %v386
    %v403 = vsel %vm387, %v141, 0.0
    %v404 = vsel %vm388, %v160, 0.0
    %v405 = vsel %vm389, %v179, 0.0
    %v406 = vsel %vm390, %v198, 0.0
    %v407 = vsel %vm391, %v143, 0.0
    %v408 = vsel %vm392, %v162, 0.0
    %v409 = vsel %vm393, %v181, 0.0
    %v410 = vsel %vm394, %v200, 0.0
    %v411 = vsel %vm395, %v146, 0.0
    %v412 = vsel %vm396, %v165, 0.0
    %v413 = vsel %vm397, %v184, 0.0
    %v414 = vsel %vm398, %v203, 0.0
    %v415 = vsel %vm399, %v148, 0.0
    %v416 = vsel %vm400, %v167, 0.0
    %v417 = vsel %vm401, %v186, 0.0
    %v418 = vsel %vm402, %v205, 0.0
    %v419 = vadd.f32 %v403, %v404
    %v420 = vadd.f32 %v419, %v405
    %v421 = vadd.f32 %v420, %v406
    %422 = vadd.xlane.f32.xlu0 %v421
    %v423 = vpop.xlane.xlu0 %422
    %v424 = vadd.f32 %v407, %v408
    %v425 = vadd.f32 %v424, %v409
    %v426 = vadd.f32 %v425, %v410
    %427 = vadd.xlane.f32.xlu0 %v426
    %v428 = vpop.xlane.xlu0 %427
    %v429 = vadd.f32 %v411, %v412
    %v430 = vadd.f32 %v429, %v413
    %v431 = vadd.f32 %v430, %v414
    %432 = vadd.xlane.f32.xlu0 %v431
    %v433 = vpop.xlane.xlu0 %432
    %v434 = vadd.f32 %v415, %v416
    %v435 = vadd.f32 %v434, %v417
    %v436 = vadd.f32 %v435, %v418
    %437 = vadd.xlane.f32.xlu0 %v436
    %v438 = vpop.xlane.xlu0 %437
    %v439 = vadd.f32 %v371, %v423
    %v440 = vadd.f32 %v372, %v428
    %v441 = vadd.f32 %v373, %v433
    %v442 = vadd.f32 %v374, %v438
    %443 = vst.msk [vmem:[#allocation4] sm:$0xff] %vm362, %v439
    %444 = vst.msk [vmem:[#allocation4 + $0x8] sm:$0xff] %vm362, %v440
    %445 = vst.msk [vmem:[#allocation4 + $0x10] sm:$0xff] %vm362, %v441
    %446 = vst.msk [vmem:[#allocation4 + $0x18] sm:$0xff] %vm362, %v442
    // Predicated region
    $region26: #{tpu_custom_call.1} parent=1 // pred_check
      %p447 = pneg %p35
    $region27: #{tpu_custom_call.1} parent=1 // pred_check_branch
      %449 = sbr.rel (%p447) target = $region29
    $region28: #{tpu_custom_call.1} parent=1 // pred_region
      %v450 = vld [vmem:[#allocation2] sm:$0xff]
      %v451 = vld [vmem:[#allocation2 + $0x8] sm:$0xff]
      %v452 = vld [vmem:[#allocation2 + $0x10] sm:$0xff]
      %v453 = vld [vmem:[#allocation2 + $0x18] sm:$0xff]
      %v454 = vld [vmem:[#allocation3] sm:$0xff]
      %v455 = vld [vmem:[#allocation3 + $0x8] sm:$0xff]
      %v456 = vld [vmem:[#allocation3 + $0x10] sm:$0xff]
      %v457 = vld [vmem:[#allocation3 + $0x18] sm:$0xff]
      %v458 = vlog2.pop %v454
      %v459 = vmul.f32 %v458, 0.6931472
      %v460 = vlog2.pop %v455
      %v461 = vmul.f32 %v460, 0.6931472
      %v462 = vlog2.pop %v456
      %v463 = vmul.f32 %v462, 0.6931472
      %v464 = vlog2.pop %v457
      %v465 = vmul.f32 %v464, 0.6931472
      %v466 = vadd.f32 %v450, %v459
      %v467 = vadd.f32 %v451, %v461
      %v468 = vadd.f32 %v452, %v463
      %v469 = vadd.f32 %v453, %v465
      %vm470 = vcmp.eq.s32.totalorder %v207, 4294967196
      %vm471 = vcmp.eq.s32.totalorder %v208, 4294967196
      %vm472 = vcmp.eq.s32.totalorder %v209, 4294967196
      %vm473 = vcmp.eq.s32.totalorder %v210, 4294967196
      %v474 = vld [vmem:[#allocation4] sm:$0xff]
      %v475 = vld [vmem:[#allocation4 + $0x8] sm:$0xff]
      %v476 = vld [vmem:[#allocation4 + $0x10] sm:$0xff]
      %v477 = vld [vmem:[#allocation4 + $0x18] sm:$0xff]
      %v478 = vsub.f32 %v466, %v474
      %v479 = vsub.f32 %v467, %v475
      %v480 = vsub.f32 %v468, %v476
      %v481 = vsub.f32 %v469, %v477
      %v482 = vsel %vm470, 0.0, %v478
      %v483 = vsel %vm471, 0.0, %v479
      %v484 = vsel %vm472, 0.0, %v480
      %v485 = vsel %vm473, 0.0, %v481
      %487 = vset.pattern.permute.xlu0 0
      %488 = vperm.xlu0 %487, %v482
      %v489 = vpop.permute.xlu0 %488
      %492 = vset.pattern.permute.xlu0 0
      %493 = vperm.xlu0 %492, %v483
      %v494 = vpop.permute.xlu0 %493
      %497 = vset.pattern.permute.xlu0 0
      %498 = vperm.xlu0 %497, %v484
      %v499 = vpop.permute.xlu0 %498
      %502 = vset.pattern.permute.xlu0 0
      %503 = vperm.xlu0 %502, %v485
      %v504 = vpop.permute.xlu0 %503
      %506 = vst [vmem:[#allocation8] sm:$0xff] %v489
      %507 = vst [vmem:[#allocation8 + $0x8] sm:$0xff] %v494
      %508 = vst [vmem:[#allocation8 + $0x10] sm:$0xff] %v499
      %509 = vst [vmem:[#allocation8 + $0x18] sm:$0xff] %v504
    $region29: #{tpu_custom_call.1} parent=1 // pred_fallthru
      _
    // Predicated region
    $region30: #{tpu_custom_call.1} parent=1 // pred_check
      _
    $region31: #{tpu_custom_call.1} parent=1 // pred_check_branch
      %511 = sbr.rel (0) target = $region33
    $region32: #{tpu_custom_call.1} parent=1 // pred_region
      %513 = vsyncadd [#allocation7], 0
      %s514 = sshll.u32 [#allocation8], 4
      %s515 = int_to_ptr.vmem [resolvable:$true] %s514
      %s516 = sshll.u32 %s4, 4
      %s517 = int_to_ptr.hbm [resolvable:$true] %s516
      %522 = dma.vmem_to_hbm [thread:$0]  %s515, 512, %s517, [#allocation7], 128, 128, 8
    $region33: #{tpu_custom_call.1} parent=1 // pred_fallthru
      _
    // Predicated region
    $region34: #{tpu_custom_call.1} parent=1 // pred_check
      _
    $region35: #{tpu_custom_call.1} parent=1 // pred_check_branch
      %524 = sbr.rel (0) target = $region37
    $region36: #{tpu_custom_call.1} parent=1 // pred_region
      %526 = dma.done [#allocation7], 512
    $region37: #{tpu_custom_call.1} parent=1 // pred_fallthru
      _
    %527 = vsyncpa [#allocation6], 1
    %528 = vsyncpa [#allocation7], 1

</llo_original>
